<compile_context>
chip_gen: v6e
topology: v6e:2x2x1
jax: 0.10.0
libtpu: 0.0.40
codegen_flags: <defaults>
</compile_context>

<pallas_src>
import jax
import jax.numpy as jnp
from jax.experimental import pallas as pl
from jax.experimental.pallas import tpu as pltpu


# Conservative cross-generation VMEM constants.
VMEM_BUDGET = 20 << 20   # per-step working-set target (fits v5e/v6e/v7x comfortably)
VMEM_LIMIT = 48 << 20    # explicit scoped limit: > 16/32 MiB defaults, < v7x 64 MiB phys


def _make_kernel(H, W, nb, compute_dtype):
    """Kernel closure over static spatial dims; processes nb images per grid step."""
    HW = H * W

    def kernel(x_ref, w1_ref, w2_ref, w3_ref, s3_ref, t1_ref, t2_ref, t3_ref,
               mask_ref, out_ref):
        cdt = compute_dtype
        w1 = w1_ref[...]          # (Cp, Cin)       cdt, resident across grid steps
        w3 = w3_ref[...]          # (Cp, Cp)        cdt, resident
        s3 = s3_ref[...]          # (Cp, 1)         f32
        t1 = t1_ref[...]          # (Cp, 1)         f32
        t2 = t2_ref[...]          # (Cp, 1)         f32
        t3 = t3_ref[...]          # (Cp, 1)         f32

        for i in range(nb):       # static unroll over the images in this block
            x = x_ref[i].astype(cdt)                               # (Cin, HW)

            # ---- conv1 (1x1; bn1 scale folded into w1) + shift + relu (f32 accum)
            h1 = jnp.dot(w1, x, preferred_element_type=jnp.float32)   # (Cp, HW)
            h1 = jnp.maximum(h1 + t1, 0.0)
            h1c = h1.astype(cdt)               # cast ONCE before the im2col rolls

            # ---- conv2 (3x3, pad=1): im2col via lane rolls + precomputed border
            #      masks; three row-group matmuls accumulated in f32.
            acc = t2                            # (Cp, 1) -> broadcasts on first add
            for ky in range(3):
                taps = []
                for kx in range(3):
                    off = (ky - 1) * W + (kx - 1)
                    tap = h1c if off == 0 else pltpu.roll(h1c, (-off) % HW, axis=1)
                    k = ky * 3 + kx
                    if k != 4:                  # center tap never needs a mask
                        tap = tap * mask_ref[pl.ds(k, 1), :]
                    taps.append(tap)
                stacked = jnp.concatenate(taps, axis=0)            # (3*Cp, HW) cdt
                acc = acc + jnp.dot(w2_ref[ky], stacked,
                                    preferred_element_type=jnp.float32)
            h2 = jnp.maximum(acc, 0.0)                             # (Cp, HW) f32

            # ---- conv3 (1x1) + residual (f32 skip path) + shift + relu
            h3 = s3 * h2 + jnp.dot(w3, h2.astype(cdt),
                                   preferred_element_type=jnp.float32)
            out_ref[i] = jnp.maximum(h3 + t3, 0.0).astype(out_ref.dtype)

    return kernel


def _per_image_vmem_bytes(Cin, Cp, HW, cdt_bytes):
    # double-buffered f32 x block + double-buffered f32 out block + in-body live set
    # (h1 f32, h1c cdt, 3-tap stack cdt, f32 acc, h2 f32, h2 cast cdt, h3 f32).
    return HW * (2 * Cin * 4 + 2 * Cp * 4 + Cp * (16 + 6 * cdt_bytes))


def _pick_images_per_step(N, per_image_bytes):
    """LARGEST divisor of N whose block fits the VMEM budget, while keeping >= 2
    grid steps (when N >= 2) so the "parallel" axis can shard over v7x's 2 TCs."""
    best = 1
    for d in range(1, N + 1):
        if N % d:
            continue
        if d * per_image_bytes > VMEM_BUDGET:
            break
        if N >= 2 and N // d < 2:
            continue
        best = d
    return best


def bottleneck_forward(x_nchw, p, stride=1, eps=1e-5, compute_dtype=jnp.bfloat16):
    """x_nchw: (N, Cin, H, W) float32 (PyTorch layout). Returns (N, Cp, H', W') f32."""
    if stride != 1:
        # Valid because this module puts the stride on the 1x1 conv1.
        x_nchw = x_nchw[:, :, ::stride, ::stride]
    N, Cin, H, W = x_nchw.shape
    Cp = p['w1'].shape[1]
    HW = H * W
    cdt = compute_dtype

    # ---- fold BN (inference) + conv biases into per-channel scales / shifts -------
    def scale_shift(g, be, m, v, b):
        s = g / jnp.sqrt(v + eps)
        return s, (be + s * (b - m)).astype(jnp.float32)

    s1, t1 = scale_shift(p['g1'], p['be1'], p['m1'], p['v1'], p['b1'])
    s2, t2 = scale_shift(p['g2'], p['be2'], p['m2'], p['v2'], p['b2'])
    s3, t3 = scale_shift(p['g3'], p['be3'], p['m3'], p['v3'], p['b3'])

    w1t = (p['w1'] * s1[None, :]).T.astype(cdt)                        # (Cp, Cin)
    w2f = p['w2'] * s2[None, None, None, :]                            # (3,3,Cp,Cp) HWIO
    # per-row-group im2col weights: (3, Cp_out, 3*Cp_in); column index = kx*Cp + cin
    w2g = jnp.stack([jnp.transpose(w2f[ky], (2, 0, 1)).reshape(Cp, 3 * Cp)
                     for ky in range(3)]).astype(cdt)
    w3t = (p['w3'] * s3[None, :]).T.astype(cdt)                        # (Cp, Cp)

    s3c = s3.reshape(Cp, 1).astype(jnp.float32)
    t1c, t2c, t3c = (t.reshape(Cp, 1) for t in (t1, t2, t3))

    # ---- precompute the 9 border masks (1 = tap lands inside the image) -----------
    yy, xx = jnp.meshgrid(jnp.arange(H), jnp.arange(W), indexing='ij')
    masks = []
    for ky in range(3):
        for kx in range(3):
            dy, dx = ky - 1, kx - 1
            m = jnp.ones((H, W), bool)
            if dy == -1:
                m = m & (yy >= 1)
            if dy == 1:
                m = m & (yy <= H - 2)
            if dx == -1:
                m = m & (xx >= 1)
            if dx == 1:
                m = m & (xx <= W - 2)
            masks.append(m.reshape(HW))
    mask_arr = jnp.stack(masks).astype(cdt)                            # (9, HW)

    # ---- NCHW blocks: channels on sublanes, H*W pixels on lanes (free reshape) ----
    x_flat = x_nchw.reshape(N, Cin, HW)
    nb = _pick_images_per_step(
        N, _per_image_vmem_bytes(Cin, Cp, HW, jnp.dtype(cdt).itemsize))
    steps = N // nb

    kernel = _make_kernel(H, W, nb, cdt)

    grid_spec = pltpu.PrefetchScalarGridSpec(
        num_scalar_prefetch=0,
        grid=(steps,),
        in_specs=[
            pl.BlockSpec((nb, Cin, HW), lambda i: (i, 0, 0)),     # x block (pipelined)
            pl.BlockSpec((Cp, Cin), lambda i: (0, 0)),            # w1 (resident)
            pl.BlockSpec((3, Cp, 3 * Cp), lambda i: (0, 0, 0)),   # w2 row groups
            pl.BlockSpec((Cp, Cp), lambda i: (0, 0)),             # w3
            pl.BlockSpec((Cp, 1), lambda i: (0, 0)),              # s3 (f32 skip scale)
            pl.BlockSpec((Cp, 1), lambda i: (0, 0)),              # t1
            pl.BlockSpec((Cp, 1), lambda i: (0, 0)),              # t2
            pl.BlockSpec((Cp, 1), lambda i: (0, 0)),              # t3
            pl.BlockSpec((9, HW), lambda i: (0, 0)),              # border masks
        ],
        out_specs=pl.BlockSpec((nb, Cp, HW), lambda i: (i, 0, 0)),
    )

    out = pl.pallas_call(
        kernel,
        out_shape=jax.ShapeDtypeStruct((N, Cp, HW), jnp.float32),
        grid_spec=grid_spec,
        compiler_params=pltpu.CompilerParams(
            dimension_semantics=("parallel",),
            vmem_limit_bytes=VMEM_LIMIT,
        ),
    )(x_flat, w1t, w2g, w3t, s3c, t1c, t2c, t3c, mask_arr)

    return out.reshape(N, Cp, H, W)                 # free reshape, no transpose


def ref_forward(x, p, stride=1, eps=1e-5):
    """Pure-JAX NCHW reference mirroring the PyTorch module (inference-form BN)."""
    dn = ('NCHW', 'HWIO', 'NCHW')

    def bn(y, g, b, m, v):
        g, b, m, v = (a.reshape(1, -1, 1, 1) for a in (g, b, m, v))
        return (y - m) / jnp.sqrt(v + eps) * g + b

    def bias(y, b):
        return y + b.reshape(1, -1, 1, 1)

    h = jax.lax.conv_general_dilated(x, p['w1'][None, None], (stride, stride),
                                     'VALID', dimension_numbers=dn)
    h = jax.nn.relu(bn(bias(h, p['b1']), p['g1'], p['be1'], p['m1'], p['v1']))
    h = jax.lax.conv_general_dilated(h, p['w2'], (1, 1),
                                     ((1, 1), (1, 1)), dimension_numbers=dn)
    h = jax.nn.relu(bn(bias(h, p['b2']), p['g2'], p['be2'], p['m2'], p['v2']))
    h = h + bias(jax.lax.conv_general_dilated(h, p['w3'][None, None], (1, 1),
                                              'VALID', dimension_numbers=dn), p['b3'])
    h = jax.nn.relu(bn(h, p['g3'], p['be3'], p['m3'], p['v3']))
    return h


def make_params(key, cin, cp):
    ks = jax.random.split(key, 18)
    f32 = jnp.float32

    def bn_params(k0, k1, k2, k3):
        g = 1.0 + 0.1 * jax.random.normal(k0, (cp,), f32)
        b = 0.1 * jax.random.normal(k1, (cp,), f32)
        m = 0.1 * jax.random.normal(k2, (cp,), f32)
        v = 0.5 + jnp.abs(jax.random.normal(k3, (cp,), f32)) * 0.5
        return g, b, m, v

    p = {
        'w1': 0.2 * jax.random.normal(ks[0], (cin, cp), f32),
        'b1': 0.1 * jax.random.normal(ks[1], (cp,), f32),
        'w2': 0.1 * jax.random.normal(ks[2], (3, 3, cp, cp), f32),
        'b2': 0.1 * jax.random.normal(ks[3], (cp,), f32),
        'w3': 0.2 * jax.random.normal(ks[4], (cp, cp), f32),
        'b3': 0.1 * jax.random.normal(ks[5], (cp,), f32),
    }
    p['g1'], p['be1'], p['m1'], p['v1'] = bn_params(*ks[6:10])
    p['g2'], p['be2'], p['m2'], p['v2'] = bn_params(*ks[10:14])
    p['g3'], p['be3'], p['m3'], p['v3'] = bn_params(*ks[14:18])
    return p


if __name__ == "__main__":
    N, Cin, Cp, H, W = 2, 4, 8, 16, 16      # inplanes=4, planes=8, stride=1
    stride = 1

    key = jax.random.PRNGKey(0)
    kx_, kp_ = jax.random.split(key)
    params = make_params(kp_, Cin, Cp)

    # PyTorch-style NCHW input — consumed directly, no layout passes in the wrapper.
    x_nchw = jax.random.normal(kx_, (N, Cin, H, W), jnp.float32)

    ref = jax.block_until_ready(ref_forward(x_nchw, params, stride=stride))
    ref_peak = float(jnp.max(jnp.abs(ref)))

    # Exact path: f32 MXU operands (tight check of layout / im2col / folding math).
    out_f32 = jax.block_until_ready(
        bottleneck_forward(x_nchw, params, stride=stride, compute_dtype=jnp.float32))
    err_f32 = float(jnp.max(jnp.abs(out_f32 - ref)))
    assert err_f32 < 1e-3, f"f32 path mismatch vs reference: {err_f32}"

    # Fast path: bf16 MXU operands, f32 accumulation, f32 residual skip path.
    out_bf16 = jax.block_until_ready(
        bottleneck_forward(x_nchw, params, stride=stride, compute_dtype=jnp.bfloat16))
    err_bf16 = float(jnp.max(jnp.abs(out_bf16 - ref)))
    assert err_bf16 < 2e-2 * (1.0 + ref_peak), \
        f"bf16 path mismatch vs reference: {err_bf16} (peak {ref_peak})"

    print("KERNEL_OK")
</pallas_src>

<mosaic_0001>
module attributes {stable_mosaic.version = 11 : i64} {
  func.func @kernel(%arg0: i32, %arg1: memref<1x4x256xf32, #tpu.memory_space<vmem>>, %arg2: memref<8x4xf32, #tpu.memory_space<vmem>>, %arg3: memref<3x8x24xf32, #tpu.memory_space<vmem>>, %arg4: memref<8x8xf32, #tpu.memory_space<vmem>>, %arg5: memref<8x1xf32, #tpu.memory_space<vmem>>, %arg6: memref<8x1xf32, #tpu.memory_space<vmem>>, %arg7: memref<8x1xf32, #tpu.memory_space<vmem>>, %arg8: memref<8x1xf32, #tpu.memory_space<vmem>>, %arg9: memref<9x256xf32, #tpu.memory_space<vmem>>, %arg10: memref<1x8x256xf32, #tpu.memory_space<vmem>>) attributes {dimension_semantics = [#tpu.dimension_semantics<parallel>], iteration_bounds = array<i64: 2>, scalar_prefetch = 0 : i64, scratch_operands = 0 : i64, tpu.core_type = #tpu.core_type<tc>, window_params = [{transform_indices = @transform_0, window_bounds = array<i64: 1, 4, 256>}, {pipeline_mode = #tpu.pipeline_mode<synchronous>, transform_indices = @transform_1, window_bounds = array<i64: 8, 4>}, {pipeline_mode = #tpu.pipeline_mode<synchronous>, transform_indices = @transform_2, window_bounds = array<i64: 3, 8, 24>}, {pipeline_mode = #tpu.pipeline_mode<synchronous>, transform_indices = @transform_3, window_bounds = array<i64: 8, 8>}, {pipeline_mode = #tpu.pipeline_mode<synchronous>, transform_indices = @transform_4, window_bounds = array<i64: 8, 1>}, {pipeline_mode = #tpu.pipeline_mode<synchronous>, transform_indices = @transform_5, window_bounds = array<i64: 8, 1>}, {pipeline_mode = #tpu.pipeline_mode<synchronous>, transform_indices = @transform_6, window_bounds = array<i64: 8, 1>}, {pipeline_mode = #tpu.pipeline_mode<synchronous>, transform_indices = @transform_7, window_bounds = array<i64: 8, 1>}, {pipeline_mode = #tpu.pipeline_mode<synchronous>, transform_indices = @transform_8, window_bounds = array<i64: 9, 256>}, {transform_indices = @transform_9, window_bounds = array<i64: 1, 8, 256>}]} {
    %c0 = arith.constant 0 : index
    %c0_0 = arith.constant 0 : index
    %0 = vector.load %arg2[%c0, %c0_0] : memref<8x4xf32, #tpu.memory_space<vmem>>, vector<8x4xf32>
    %c0_1 = arith.constant 0 : index
    %c0_2 = arith.constant 0 : index
    %1 = vector.load %arg4[%c0_1, %c0_2] : memref<8x8xf32, #tpu.memory_space<vmem>>, vector<8x8xf32>
    %c0_3 = arith.constant 0 : index
    %c0_4 = arith.constant 0 : index
    %2 = vector.load %arg5[%c0_3, %c0_4] : memref<8x1xf32, #tpu.memory_space<vmem>>, vector<8x1xf32>
    %c0_5 = arith.constant 0 : index
    %c0_6 = arith.constant 0 : index
    %3 = vector.load %arg6[%c0_5, %c0_6] : memref<8x1xf32, #tpu.memory_space<vmem>>, vector<8x1xf32>
    %c0_7 = arith.constant 0 : index
    %c0_8 = arith.constant 0 : index
    %4 = vector.load %arg7[%c0_7, %c0_8] : memref<8x1xf32, #tpu.memory_space<vmem>>, vector<8x1xf32>
    %c0_9 = arith.constant 0 : index
    %c0_10 = arith.constant 0 : index
    %5 = vector.load %arg8[%c0_9, %c0_10] : memref<8x1xf32, #tpu.memory_space<vmem>>, vector<8x1xf32>
    %c0_11 = arith.constant 0 : index
    %c0_12 = arith.constant 0 : index
    %c0_13 = arith.constant 0 : index
    %6 = vector.load %arg1[%c0_11, %c0_12, %c0_13] : memref<1x4x256xf32, #tpu.memory_space<vmem>>, vector<1x4x256xf32>
    %7 = vector.shape_cast %6 : vector<1x4x256xf32> to vector<4x256xf32>
    %cst = arith.constant dense<0.000000e+00> : vector<8x256xf32>
    %8 = tpu.matmul %0, %7, %cst {dimension_numbers = #tpu.dot_dimension_numbers<[1], [0], [0], [1], [0, 0, 1, 1], [], []>} : vector<8x4xf32>, vector<4x256xf32>, vector<8x256xf32> -> vector<8x256xf32>
    %9 = vector.broadcast %3 : vector<8x1xf32> to vector<8x256xf32>
    %10 = arith.addf %8, %9 : vector<8x256xf32>
    %cst_14 = arith.constant 0.000000e+00 : f32
    %11 = vector.broadcast %cst_14 : f32 to vector<8x256xf32>
    %12 = arith.maximumf %10, %11 : vector<8x256xf32>
    %c17_i32 = arith.constant 17 : i32
    %13 = tpu.dynamic_rotate %12 by %c17_i32 dim 1 : vector<8x256xf32>, i32 -> vector<8x256xf32>
    %c0_15 = arith.constant 0 : index
    %c0_16 = arith.constant 0 : index
    %14 = vector.load %arg9[%c0_15, %c0_16] : memref<9x256xf32, #tpu.memory_space<vmem>>, vector<1x256xf32>
    %15 = vector.broadcast %14 : vector<1x256xf32> to vector<8x256xf32>
    %16 = arith.mulf %13, %15 : vector<8x256xf32>
    %c16_i32 = arith.constant 16 : i32
    %17 = tpu.dynamic_rotate %12 by %c16_i32 dim 1 : vector<8x256xf32>, i32 -> vector<8x256xf32>
    %c1 = arith.constant 1 : index
    %c0_17 = arith.constant 0 : index
    %18 = vector.load %arg9[%c1, %c0_17] : memref<9x256xf32, #tpu.memory_space<vmem>>, vector<1x256xf32>
    %19 = vector.broadcast %18 : vector<1x256xf32> to vector<8x256xf32>
    %20 = arith.mulf %17, %19 : vector<8x256xf32>
    %c15_i32 = arith.constant 15 : i32
    %21 = tpu.dynamic_rotate %12 by %c15_i32 dim 1 : vector<8x256xf32>, i32 -> vector<8x256xf32>
    %c2 = arith.constant 2 : index
    %c0_18 = arith.constant 0 : index
    %22 = vector.load %arg9[%c2, %c0_18] : memref<9x256xf32, #tpu.memory_space<vmem>>, vector<1x256xf32>
    %23 = vector.broadcast %22 : vector<1x256xf32> to vector<8x256xf32>
    %24 = arith.mulf %21, %23 : vector<8x256xf32>
    %25 = tpu.concatenate %16, %20, %24 in 0 : vector<8x256xf32>, vector<8x256xf32>, vector<8x256xf32> -> vector<24x256xf32>
    %c0_19 = arith.constant 0 : index
    %c0_20 = arith.constant 0 : index
    %c0_21 = arith.constant 0 : index
    %26 = vector.load %arg3[%c0_19, %c0_20, %c0_21] : memref<3x8x24xf32, #tpu.memory_space<vmem>>, vector<1x8x24xf32>
    %27 = vector.shape_cast %26 : vector<1x8x24xf32> to vector<8x24xf32>
    %cst_22 = arith.constant dense<0.000000e+00> : vector<8x256xf32>
    %28 = tpu.matmul %27, %25, %cst_22 {dimension_numbers = #tpu.dot_dimension_numbers<[1], [0], [0], [1], [0, 0, 1, 1], [], []>} : vector<8x24xf32>, vector<24x256xf32>, vector<8x256xf32> -> vector<8x256xf32>
    %29 = vector.broadcast %4 : vector<8x1xf32> to vector<8x256xf32>
    %30 = arith.addf %29, %28 : vector<8x256xf32>
    %c1_i32 = arith.constant 1 : i32
    %31 = tpu.dynamic_rotate %12 by %c1_i32 dim 1 : vector<8x256xf32>, i32 -> vector<8x256xf32>
    %c3 = arith.constant 3 : index
    %c0_23 = arith.constant 0 : index
    %32 = vector.load %arg9[%c3, %c0_23] : memref<9x256xf32, #tpu.memory_space<vmem>>, vector<1x256xf32>
    %33 = vector.broadcast %32 : vector<1x256xf32> to vector<8x256xf32>
    %34 = arith.mulf %31, %33 : vector<8x256xf32>
    %c255_i32 = arith.constant 255 : i32
    %35 = tpu.dynamic_rotate %12 by %c255_i32 dim 1 : vector<8x256xf32>, i32 -> vector<8x256xf32>
    %c5 = arith.constant 5 : index
    %c0_24 = arith.constant 0 : index
    %36 = vector.load %arg9[%c5, %c0_24] : memref<9x256xf32, #tpu.memory_space<vmem>>, vector<1x256xf32>
    %37 = vector.broadcast %36 : vector<1x256xf32> to vector<8x256xf32>
    %38 = arith.mulf %35, %37 : vector<8x256xf32>
    %39 = tpu.concatenate %34, %12, %38 in 0 : vector<8x256xf32>, vector<8x256xf32>, vector<8x256xf32> -> vector<24x256xf32>
    %c1_25 = arith.constant 1 : index
    %c0_26 = arith.constant 0 : index
    %c0_27 = arith.constant 0 : index
    %40 = vector.load %arg3[%c1_25, %c0_26, %c0_27] : memref<3x8x24xf32, #tpu.memory_space<vmem>>, vector<1x8x24xf32>
    %41 = vector.shape_cast %40 : vector<1x8x24xf32> to vector<8x24xf32>
    %cst_28 = arith.constant dense<0.000000e+00> : vector<8x256xf32>
    %42 = tpu.matmul %41, %39, %cst_28 {dimension_numbers = #tpu.dot_dimension_numbers<[1], [0], [0], [1], [0, 0, 1, 1], [], []>} : vector<8x24xf32>, vector<24x256xf32>, vector<8x256xf32> -> vector<8x256xf32>
    %43 = arith.addf %30, %42 : vector<8x256xf32>
    %c241_i32 = arith.constant 241 : i32
    %44 = tpu.dynamic_rotate %12 by %c241_i32 dim 1 : vector<8x256xf32>, i32 -> vector<8x256xf32>
    %c6 = arith.constant 6 : index
    %c0_29 = arith.constant 0 : index
    %45 = vector.load %arg9[%c6, %c0_29] : memref<9x256xf32, #tpu.memory_space<vmem>>, vector<1x256xf32>
    %46 = vector.broadcast %45 : vector<1x256xf32> to vector<8x256xf32>
    %47 = arith.mulf %44, %46 : vector<8x256xf32>
    %c240_i32 = arith.constant 240 : i32
    %48 = tpu.dynamic_rotate %12 by %c240_i32 dim 1 : vector<8x256xf32>, i32 -> vector<8x256xf32>
    %c7 = arith.constant 7 : index
    %c0_30 = arith.constant 0 : index
    %49 = vector.load %arg9[%c7, %c0_30] : memref<9x256xf32, #tpu.memory_space<vmem>>, vector<1x256xf32>
    %50 = vector.broadcast %49 : vector<1x256xf32> to vector<8x256xf32>
    %51 = arith.mulf %48, %50 : vector<8x256xf32>
    %c239_i32 = arith.constant 239 : i32
    %52 = tpu.dynamic_rotate %12 by %c239_i32 dim 1 : vector<8x256xf32>, i32 -> vector<8x256xf32>
    %c8 = arith.constant 8 : index
    %c0_31 = arith.constant 0 : index
    %53 = vector.load %arg9[%c8, %c0_31] : memref<9x256xf32, #tpu.memory_space<vmem>>, vector<1x256xf32>
    %54 = vector.broadcast %53 : vector<1x256xf32> to vector<8x256xf32>
    %55 = arith.mulf %52, %54 : vector<8x256xf32>
    %56 = tpu.concatenate %47, %51, %55 in 0 : vector<8x256xf32>, vector<8x256xf32>, vector<8x256xf32> -> vector<24x256xf32>
    %c2_32 = arith.constant 2 : index
    %c0_33 = arith.constant 0 : index
    %c0_34 = arith.constant 0 : index
    %57 = vector.load %arg3[%c2_32, %c0_33, %c0_34] : memref<3x8x24xf32, #tpu.memory_space<vmem>>, vector<1x8x24xf32>
    %58 = vector.shape_cast %57 : vector<1x8x24xf32> to vector<8x24xf32>
    %cst_35 = arith.constant dense<0.000000e+00> : vector<8x256xf32>
    %59 = tpu.matmul %58, %56, %cst_35 {dimension_numbers = #tpu.dot_dimension_numbers<[1], [0], [0], [1], [0, 0, 1, 1], [], []>} : vector<8x24xf32>, vector<24x256xf32>, vector<8x256xf32> -> vector<8x256xf32>
    %60 = arith.addf %43, %59 : vector<8x256xf32>
    %cst_36 = arith.constant 0.000000e+00 : f32
    %61 = vector.broadcast %cst_36 : f32 to vector<8x256xf32>
    %62 = arith.maximumf %60, %61 : vector<8x256xf32>
    %63 = vector.broadcast %2 : vector<8x1xf32> to vector<8x256xf32>
    %64 = arith.mulf %63, %62 : vector<8x256xf32>
    %cst_37 = arith.constant dense<0.000000e+00> : vector<8x256xf32>
    %65 = tpu.matmul %1, %62, %cst_37 {dimension_numbers = #tpu.dot_dimension_numbers<[1], [0], [0], [1], [0, 0, 1, 1], [], []>} : vector<8x8xf32>, vector<8x256xf32>, vector<8x256xf32> -> vector<8x256xf32>
    %66 = arith.addf %64, %65 : vector<8x256xf32>
    %67 = vector.broadcast %5 : vector<8x1xf32> to vector<8x256xf32>
    %68 = arith.addf %66, %67 : vector<8x256xf32>
    %cst_38 = arith.constant 0.000000e+00 : f32
    %69 = vector.broadcast %cst_38 : f32 to vector<8x256xf32>
    %70 = arith.maximumf %68, %69 : vector<8x256xf32>
    %c0_39 = arith.constant 0 : index
    %c0_40 = arith.constant 0 : index
    %c0_41 = arith.constant 0 : index
    %71 = vector.load %arg10[%c0_39, %c0_40, %c0_41] : memref<1x8x256xf32, #tpu.memory_space<vmem>>, vector<1x8x256xf32>
    %72 = vector.shape_cast %71 : vector<1x8x256xf32> to vector<8x256xf32>
    %73 = vector.shape_cast %70 : vector<8x256xf32> to vector<1x8x256xf32>
    tpu.vector_store %arg10[%c0_39, %c0_40, %c0_41], %73 {strides = array<i32>} : memref<1x8x256xf32, #tpu.memory_space<vmem>>, vector<1x8x256xf32>,
    return
  }
  func.func @transform_0(%arg0: i32) -> (i32, i32, i32) {
    %c0_i32 = arith.constant 0 : i32
    %c0_i32_0 = arith.constant 0 : i32
    %c0_i32_1 = arith.constant 0 : i32
    return %arg0, %c0_i32, %c0_i32_0 : i32, i32, i32
  }
  func.func @transform_1(%arg0: i32) -> (i32, i32) {
    %c0_i32 = arith.constant 0 : i32
    %c0_i32_0 = arith.constant 0 : i32
    %c0_i32_1 = arith.constant 0 : i32
    return %c0_i32, %c0_i32_0 : i32, i32
  }
  func.func @transform_2(%arg0: i32) -> (i32, i32, i32) {
    %c0_i32 = arith.constant 0 : i32
    %c0_i32_0 = arith.constant 0 : i32
    %c0_i32_1 = arith.constant 0 : i32
    %c0_i32_2 = arith.constant 0 : i32
    return %c0_i32, %c0_i32_0, %c0_i32_1 : i32, i32, i32
  }
  func.func @transform_3(%arg0: i32) -> (i32, i32) {
    %c0_i32 = arith.constant 0 : i32
    %c0_i32_0 = arith.constant 0 : i32
    %c0_i32_1 = arith.constant 0 : i32
    return %c0_i32, %c0_i32_0 : i32, i32
  }
  func.func @transform_4(%arg0: i32) -> (i32, i32) {
    %c0_i32 = arith.constant 0 : i32
    %c0_i32_0 = arith.constant 0 : i32
    %c0_i32_1 = arith.constant 0 : i32
    return %c0_i32, %c0_i32_0 : i32, i32
  }
  func.func @transform_5(%arg0: i32) -> (i32, i32) {
    %c0_i32 = arith.constant 0 : i32
    %c0_i32_0 = arith.constant 0 : i32
    %c0_i32_1 = arith.constant 0 : i32
    return %c0_i32, %c0_i32_0 : i32, i32
  }
  func.func @transform_6(%arg0: i32) -> (i32, i32) {
    %c0_i32 = arith.constant 0 : i32
    %c0_i32_0 = arith.constant 0 : i32
    %c0_i32_1 = arith.constant 0 : i32
    return %c0_i32, %c0_i32_0 : i32, i32
  }
  func.func @transform_7(%arg0: i32) -> (i32, i32) {
    %c0_i32 = arith.constant 0 : i32
    %c0_i32_0 = arith.constant 0 : i32
    %c0_i32_1 = arith.constant 0 : i32
    return %c0_i32, %c0_i32_0 : i32, i32
  }
  func.func @transform_8(%arg0: i32) -> (i32, i32) {
    %c0_i32 = arith.constant 0 : i32
    %c0_i32_0 = arith.constant 0 : i32
    %c0_i32_1 = arith.constant 0 : i32
    return %c0_i32, %c0_i32_0 : i32, i32
  }
  func.func @transform_9(%arg0: i32) -> (i32, i32, i32) {
    %c0_i32 = arith.constant 0 : i32
    %c0_i32_0 = arith.constant 0 : i32
    %c0_i32_1 = arith.constant 0 : i32
    return %arg0, %c0_i32, %c0_i32_0 : i32, i32, i32
  }
}

</mosaic_0001>

<llo_original>
// kernel: tpu_custom_call.1
$region0: #{tpu_custom_call.1}
  #allocation0 [shape = 'u32[]', space=smem, size = 0x4, offset = 0x4, fixed_abs, tag = 'smem constant byte address 0x4 - core index']
  #allocation1 [shape = 'u32[144,128]{1,0:T(1,128)}', space=vmem, size = 0x12000, scoped, tag = 'internal scratch']
  %s0 = inlined_call_operand.hbm [shape: f32[2,4,256], index: 0, kind: input, shape index: {}]
  %s1 = inlined_call_operand.vmem [shape: f32[8,4], index: 1, kind: input, shape index: {}]
  %s2 = inlined_call_operand.vmem [shape: f32[3,8,24], index: 2, kind: input, shape index: {}]
  %s3 = inlined_call_operand.hbm [shape: f32[8,8], index: 3, kind: input, shape index: {}]
  %s4 = inlined_call_operand.vmem [shape: f32[8,1], index: 4, kind: input, shape index: {}]
  %s5 = inlined_call_operand.vmem [shape: f32[8,1], index: 5, kind: input, shape index: {}]
  %s6 = inlined_call_operand.vmem [shape: f32[8,1], index: 6, kind: input, shape index: {}]
  %s7 = inlined_call_operand.vmem [shape: f32[8,1], index: 7, kind: input, shape index: {}]
  %s8 = inlined_call_operand.vmem [shape: f32[9,256], index: 8, kind: input, shape index: {}]
  %s9 = inlined_call_operand.hbm [shape: f32[2,8,256], index: 9, kind: output, shape index: {}]
  %s10 = sld [smem:[#allocation0]]
  $region77: #{tpu_custom_call.1} parent=0
    _
  %s12 = ssub.s32 1, %s10
  %s13 = scalar_select 0, %s12, %s10
  $region1: #{tpu_custom_call.1} parent=0
    #allocation2 [shape = 'u8[8192]{0}', space=vmem, size = 0x2000, scoped, tag = 'input window, operand 0']
    #allocation3 [shape = 's32[2]{0}', space=sflag, size = 0x8, scoped, tag = 'scoped memory for tpu_custom_call.1']
    #allocation4 [shape = 's32[2]{0}', space=sflag, size = 0x8, scoped, tag = 'scoped memory for tpu_custom_call.1']
    #allocation5 [shape = 'u8[4096]{0}', space=vmem, size = 0x1000, scoped, tag = 'input window, operand 3, single buffered']
    #allocation6 [shape = 's32[1]{0}', space=sflag, size = 0x4, scoped, tag = 'scoped memory for tpu_custom_call.1']
    #allocation7 [shape = 'u8[16384]{0}', space=vmem, size = 0x4000, scoped, tag = 'output window, operand 0']
    %14 = vsyncpa [#allocation3], 0
    %s15 = scalar_lea.sflag [#allocation3], 1
    %16 = vsyncpa %s15, 0
    %17 = vsyncpa [#allocation6], 0
    %18 = vsyncpa [#allocation4], 0
    %s19 = scalar_lea.sflag [#allocation4], 1
    %20 = vsyncpa %s19, 0
    loop: start=0, step=1, limit=4
    $region2: #{tpu_custom_call.1} parent=1 // loop_pre_header
      _
    $region3: #{tpu_custom_call.1} parent=1 // loop_header
      %s22 = sphi 0, %s26
      %p23 = scmp.ge.s32.totalorder %s22, 4
      %s32 = sphi 0, %s34
      %s35 = sphi 0, %s32
      %s36 = sphi 0, %s35
      %s52 = sphi 0, %s36
      %s56 = sphi 0, %s56
      %s58 = sphi 0, %s56
      %s59 = sphi 0, %s58
      %s73 = sphi 0, %s59
      %s77 = sphi 0, %s77
      %s79 = sphi 0, %s77
      %s80 = sphi 0, %s79
      %s94 = sphi 0, %s80
      %s98 = sphi 0, %s98
      %s100 = sphi 0, %s98
      %s101 = sphi 0, %s100
      %s115 = sphi 0, %s101
      %s119 = sphi 0, %s119
      %s121 = sphi 0, %s119
      %s122 = sphi 0, %s121
      %s136 = sphi 0, %s122
      %s140 = sphi 0, %s140
      %s142 = sphi 0, %s140
      %s143 = sphi 0, %s142
      %s157 = sphi 0, %s143
      %s161 = sphi 0, %s161
      %s163 = sphi 0, %s161
      %s164 = sphi 0, %s163
      %s178 = sphi 0, %s164
      %s182 = sphi 0, %s182
      %s184 = sphi 0, %s182
      %s185 = sphi 0, %s184
      %s199 = sphi 0, %s185
      %s203 = sphi 0, %s203
      %s205 = sphi 0, %s203
      %s206 = sphi 0, %s205
      %s220 = sphi 0, %s206
      %s226 = sphi 0, %s228
      %s229 = sphi 0, %s226
      %s230 = sphi 0, %s229
      %s246 = sphi 0, %s230
    $region4: #{tpu_custom_call.1} parent=1 // loop_header_branch
      %25 = sbr.rel (%p23) target = $region8
    $region5: #{tpu_custom_call.1} parent=1 // loop_body
      %s27 = ssub.s32 %s22, 1
      %s28 = ssub.s32 %s22, 2
      %s29 = sadd.s32 %s22, 1
      %s30 = ssub.s32 %s22, %s29
      %p31 = scmp.eq.s32.totalorder %s30, 0
      %s33 = sadd.s32 %s32, 1
      %s34 = scalar_select %p31, %s32, %s33
      %p37 = pneg %p31
      %p38 = scmp.eq.s32.totalorder %s22, 1
      %p39 = por %p37, %p38
      %p40 = scmp.ne.s32.totalorder %s32, %s35
      %p41 = scmp.eq.s32.totalorder %s22, 0
      %p42 = por %p40, %p41
      %p43 = scmp.ne.s32.totalorder %s32, %s35
      %p44 = scmp.eq.s32.totalorder %s27, 1
      %p45 = por %p43, %p44
      %p46 = scmp.ne.s32.totalorder %s35, %s36
      %p47 = scmp.eq.s32.totalorder %s27, 0
      %p48 = por %p46, %p47
      %p49 = scmp.ne.s32.totalorder %s35, %s36
      %p50 = scmp.eq.s32.totalorder %s28, 1
      %p51 = por %p49, %p50
      %p53 = scmp.ne.s32.totalorder %s36, %s52
      %p54 = scmp.eq.s32.totalorder %s28, 0
      %p55 = por %p53, %p54
      %s57 = sadd.s32 %s56, 1
      %p60 = scmp.eq.s32.totalorder %s22, 1
      %p61 = scmp.ne.s32.totalorder %s56, %s58
      %p62 = scmp.eq.s32.totalorder %s22, 0
      %p63 = por %p61, %p62
      %p64 = scmp.ne.s32.totalorder %s56, %s58
      %p65 = scmp.eq.s32.totalorder %s27, 1
      %p66 = por %p64, %p65
      %p67 = scmp.ne.s32.totalorder %s58, %s59
      %p68 = scmp.eq.s32.totalorder %s27, 0
      %p69 = por %p67, %p68
      %p70 = scmp.ne.s32.totalorder %s58, %s59
      %p71 = scmp.eq.s32.totalorder %s28, 1
      %p72 = por %p70, %p71
      %p74 = scmp.ne.s32.totalorder %s59, %s73
      %p75 = scmp.eq.s32.totalorder %s28, 0
      %p76 = por %p74, %p75
      %s78 = sadd.s32 %s77, 1
      %p81 = scmp.eq.s32.totalorder %s22, 1
      %p82 = scmp.ne.s32.totalorder %s77, %s79
      %p83 = scmp.eq.s32.totalorder %s22, 0
      %p84 = por %p82, %p83
      %p85 = scmp.ne.s32.totalorder %s77, %s79
      %p86 = scmp.eq.s32.totalorder %s27, 1
      %p87 = por %p85, %p86
      %p88 = scmp.ne.s32.totalorder %s79, %s80
      %p89 = scmp.eq.s32.totalorder %s27, 0
      %p90 = por %p88, %p89
      %p91 = scmp.ne.s32.totalorder %s79, %s80
      %p92 = scmp.eq.s32.totalorder %s28, 1
      %p93 = por %p91, %p92
      %p95 = scmp.ne.s32.totalorder %s80, %s94
      %p96 = scmp.eq.s32.totalorder %s28, 0
      %p97 = por %p95, %p96
      %s99 = sadd.s32 %s98, 1
      %p102 = scmp.eq.s32.totalorder %s22, 1
      %p103 = scmp.ne.s32.totalorder %s98, %s100
      %p104 = scmp.eq.s32.totalorder %s22, 0
      %p105 = por %p103, %p104
      %p106 = scmp.ne.s32.totalorder %s98, %s100
      %p107 = scmp.eq.s32.totalorder %s27, 1
      %p108 = por %p106, %p107
      %p109 = scmp.ne.s32.totalorder %s100, %s101
      %p110 = scmp.eq.s32.totalorder %s27, 0
      %p111 = por %p109, %p110
      %p112 = scmp.ne.s32.totalorder %s100, %s101
      %p113 = scmp.eq.s32.totalorder %s28, 1
      %p114 = por %p112, %p113
      %p116 = scmp.ne.s32.totalorder %s101, %s115
      %p117 = scmp.eq.s32.totalorder %s28, 0
      %p118 = por %p116, %p117
      %s120 = sadd.s32 %s119, 1
      %p123 = scmp.eq.s32.totalorder %s22, 1
      %p124 = scmp.ne.s32.totalorder %s119, %s121
      %p125 = scmp.eq.s32.totalorder %s22, 0
      %p126 = por %p124, %p125
      %p127 = scmp.ne.s32.totalorder %s119, %s121
      %p128 = scmp.eq.s32.totalorder %s27, 1
      %p129 = por %p127, %p128
      %p130 = scmp.ne.s32.totalorder %s121, %s122
      %p131 = scmp.eq.s32.totalorder %s27, 0
      %p132 = por %p130, %p131
      %p133 = scmp.ne.s32.totalorder %s121, %s122
      %p134 = scmp.eq.s32.totalorder %s28, 1
      %p135 = por %p133, %p134
      %p137 = scmp.ne.s32.totalorder %s122, %s136
      %p138 = scmp.eq.s32.totalorder %s28, 0
      %p139 = por %p137, %p138
      %s141 = sadd.s32 %s140, 1
      %p144 = scmp.eq.s32.totalorder %s22, 1
      %p145 = scmp.ne.s32.totalorder %s140, %s142
      %p146 = scmp.eq.s32.totalorder %s22, 0
      %p147 = por %p145, %p146
      %p148 = scmp.ne.s32.totalorder %s140, %s142
      %p149 = scmp.eq.s32.totalorder %s27, 1
      %p150 = por %p148, %p149
      %p151 = scmp.ne.s32.totalorder %s142, %s143
      %p152 = scmp.eq.s32.totalorder %s27, 0
      %p153 = por %p151, %p152
      %p154 = scmp.ne.s32.totalorder %s142, %s143
      %p155 = scmp.eq.s32.totalorder %s28, 1
      %p156 = por %p154, %p155
      %p158 = scmp.ne.s32.totalorder %s143, %s157
      %p159 = scmp.eq.s32.totalorder %s28, 0
      %p160 = por %p158, %p159
      %s162 = sadd.s32 %s161, 1
      %p165 = scmp.eq.s32.totalorder %s22, 1
      %p166 = scmp.ne.s32.totalorder %s161, %s163
      %p167 = scmp.eq.s32.totalorder %s22, 0
      %p168 = por %p166, %p167
      %p169 = scmp.ne.s32.totalorder %s161, %s163
      %p170 = scmp.eq.s32.totalorder %s27, 1
      %p171 = por %p169, %p170
      %p172 = scmp.ne.s32.totalorder %s163, %s164
      %p173 = scmp.eq.s32.totalorder %s27, 0
      %p174 = por %p172, %p173
      %p175 = scmp.ne.s32.totalorder %s163, %s164
      %p176 = scmp.eq.s32.totalorder %s28, 1
      %p177 = por %p175, %p176
      %p179 = scmp.ne.s32.totalorder %s164, %s178
      %p180 = scmp.eq.s32.totalorder %s28, 0
      %p181 = por %p179, %p180
      %s183 = sadd.s32 %s182, 1
      %p186 = scmp.eq.s32.totalorder %s22, 1
      %p187 = scmp.ne.s32.totalorder %s182, %s184
      %p188 = scmp.eq.s32.totalorder %s22, 0
      %p189 = por %p187, %p188
      %p190 = scmp.ne.s32.totalorder %s182, %s184
      %p191 = scmp.eq.s32.totalorder %s27, 1
      %p192 = por %p190, %p191
      %p193 = scmp.ne.s32.totalorder %s184, %s185
      %p194 = scmp.eq.s32.totalorder %s27, 0
      %p195 = por %p193, %p194
      %p196 = scmp.ne.s32.totalorder %s184, %s185
      %p197 = scmp.eq.s32.totalorder %s28, 1
      %p198 = por %p196, %p197
      %p200 = scmp.ne.s32.totalorder %s185, %s199
      %p201 = scmp.eq.s32.totalorder %s28, 0
      %p202 = por %p200, %p201
      %s204 = sadd.s32 %s203, 1
      %p207 = scmp.eq.s32.totalorder %s22, 1
      %p208 = scmp.ne.s32.totalorder %s203, %s205
      %p209 = scmp.eq.s32.totalorder %s22, 0
      %p210 = por %p208, %p209
      %p211 = scmp.ne.s32.totalorder %s203, %s205
      %p212 = scmp.eq.s32.totalorder %s27, 1
      %p213 = por %p211, %p212
      %p214 = scmp.ne.s32.totalorder %s205, %s206
      %p215 = scmp.eq.s32.totalorder %s27, 0
      %p216 = por %p214, %p215
      %p217 = scmp.ne.s32.totalorder %s205, %s206
      %p218 = scmp.eq.s32.totalorder %s28, 1
      %p219 = por %p217, %p218
      %p221 = scmp.ne.s32.totalorder %s206, %s220
      %p222 = scmp.eq.s32.totalorder %s28, 0
      %p223 = por %p221, %p222
      %s224 = ssub.s32 %s22, %s29
      %p225 = scmp.eq.s32.totalorder %s224, 0
      %s227 = sadd.s32 %s226, 1
      %s228 = scalar_select %p225, %s226, %s227
      %p231 = pneg %p225
      %p232 = scmp.eq.s32.totalorder %s22, 1
      %p233 = por %p231, %p232
      %p234 = scmp.ne.s32.totalorder %s226, %s229
      %p235 = scmp.eq.s32.totalorder %s22, 0
      %p236 = por %p234, %p235
      %p237 = scmp.ne.s32.totalorder %s226, %s229
      %p238 = scmp.eq.s32.totalorder %s27, 1
      %p239 = por %p237, %p238
      %p240 = scmp.ne.s32.totalorder %s229, %s230
      %p241 = scmp.eq.s32.totalorder %s27, 0
      %p242 = por %p240, %p241
      %p243 = scmp.ne.s32.totalorder %s229, %s230
      %p244 = scmp.eq.s32.totalorder %s28, 1
      %p245 = por %p243, %p244
      %p247 = scmp.ne.s32.totalorder %s230, %s246
      %p248 = scmp.eq.s32.totalorder %s28, 0
      %p249 = por %p247, %p248
      %p250 = scmp.le.s32.totalorder 1, %s22
      %p251 = scmp.lt.s32.totalorder %s22, 3
      %p252 = pnand %p250, %p251
      %p253 = pneg %p252
      // Predicated region
      $region9: #{tpu_custom_call.1} parent=5 // pred_check
        _
      $region10: #{tpu_custom_call.1} parent=5 // pred_check_branch
        %255 = sbr.rel (%p252) target = $region12
      $region11: #{tpu_custom_call.1} parent=5 // pred_region
        %s256 = ssub.s32 %s22, 1
        // Predicated region
        $region13: #{tpu_custom_call.1} parent=11 // pred_check
          %p257 = pneg %p69
        $region14: #{tpu_custom_call.1} parent=11 // pred_check_branch
          %259 = sbr.rel (%p257) target = $region16
        $region15: #{tpu_custom_call.1} parent=11 // pred_region
          _
        $region16: #{tpu_custom_call.1} parent=11 // pred_fallthru
          _
        // Predicated region
        $region17: #{tpu_custom_call.1} parent=11 // pred_check
          %p260 = pneg %p90
        $region18: #{tpu_custom_call.1} parent=11 // pred_check_branch
          %262 = sbr.rel (%p260) target = $region20
        $region19: #{tpu_custom_call.1} parent=11 // pred_region
          _
        $region20: #{tpu_custom_call.1} parent=11 // pred_fallthru
          _
        // Predicated region
        $region21: #{tpu_custom_call.1} parent=11 // pred_check
          %p263 = pneg %p111
        $region22: #{tpu_custom_call.1} parent=11 // pred_check_branch
          %265 = sbr.rel (%p263) target = $region24
        $region23: #{tpu_custom_call.1} parent=11 // pred_region
          %s267 = ssub.s32 128, 128
          %268 = vsyncadd [#allocation6], %s267
          %s270 = sshll.u32 [#allocation5], 4
          %s271 = int_to_ptr.vmem [resolvable:$true] %s270
          %273 = dma.hbm_to_vmem [thread:$0]  %s3, 128, %s271, [#allocation6]
        $region24: #{tpu_custom_call.1} parent=11 // pred_fallthru
          _
        // Predicated region
        $region25: #{tpu_custom_call.1} parent=11 // pred_check
          %p274 = pneg %p132
        $region26: #{tpu_custom_call.1} parent=11 // pred_check_branch
          %276 = sbr.rel (%p274) target = $region28
        $region27: #{tpu_custom_call.1} parent=11 // pred_region
          _
        $region28: #{tpu_custom_call.1} parent=11 // pred_fallthru
          _
        // Predicated region
        $region29: #{tpu_custom_call.1} parent=11 // pred_check
          %p277 = pneg %p153
        $region30: #{tpu_custom_call.1} parent=11 // pred_check_branch
          %279 = sbr.rel (%p277) target = $region32
        $region31: #{tpu_custom_call.1} parent=11 // pred_region
          _
        $region32: #{tpu_custom_call.1} parent=11 // pred_fallthru
          _
        // Predicated region
        $region33: #{tpu_custom_call.1} parent=11 // pred_check
          %p280 = pneg %p174
        $region34: #{tpu_custom_call.1} parent=11 // pred_check_branch
          %282 = sbr.rel (%p280) target = $region36
        $region35: #{tpu_custom_call.1} parent=11 // pred_region
          _
        $region36: #{tpu_custom_call.1} parent=11 // pred_fallthru
          _
        // Predicated region
        $region37: #{tpu_custom_call.1} parent=11 // pred_check
          %p283 = pneg %p195
        $region38: #{tpu_custom_call.1} parent=11 // pred_check_branch
          %285 = sbr.rel (%p283) target = $region40
        $region39: #{tpu_custom_call.1} parent=11 // pred_region
          _
        $region40: #{tpu_custom_call.1} parent=11 // pred_fallthru
          _
        // Predicated region
        $region41: #{tpu_custom_call.1} parent=11 // pred_check
          %p286 = pneg %p216
        $region42: #{tpu_custom_call.1} parent=11 // pred_check_branch
          %288 = sbr.rel (%p286) target = $region44
        $region43: #{tpu_custom_call.1} parent=11 // pred_region
          _
        $region44: #{tpu_custom_call.1} parent=11 // pred_fallthru
          _
      $region12: #{tpu_custom_call.1} parent=5 // pred_fallthru
        _
      %p289 = scmp.lt.s32.totalorder %s22, 2
      // Predicated region
      $region45: #{tpu_custom_call.1} parent=5 // pred_check
        %p290 = pneg %p289
      $region46: #{tpu_custom_call.1} parent=5 // pred_check_branch
        %292 = sbr.rel (%p290) target = $region48
      $region47: #{tpu_custom_call.1} parent=5 // pred_region
        // Predicated region
        $region49: #{tpu_custom_call.1} parent=47 // pred_check
          %p293 = pneg %p42
        $region50: #{tpu_custom_call.1} parent=47 // pred_check_branch
          %295 = sbr.rel (%p293) target = $region52
        $region51: #{tpu_custom_call.1} parent=47 // pred_region
          %s296 = sand.u32 %s32, 1
          %s297 = scalar_lea.sflag [#allocation3], %s296
          %s298 = sand.u32 %s32, 1
          %s299 = smul.addr %s298, 8
          %s300 = scalar_lea.vmem [#allocation2], %s299
          %s302 = ssub.s32 128, 128
          %303 = vsyncadd %s297, %s302
          %s304 = smul.addr %s22, 2
          %s305 = smul.addr %s304, 64
          %s306 = scalar_lea.hbm %s0, %s305
          %s308 = sshll.u32 %s300, 4
          %s309 = int_to_ptr.vmem [resolvable:$true] %s308
          %311 = dma.hbm_to_vmem [thread:$0]  %s306, 128, %s309, %s297
        $region52: #{tpu_custom_call.1} parent=47 // pred_fallthru
          _
      $region48: #{tpu_custom_call.1} parent=5 // pred_fallthru
        _
      %p312 = scmp.le.s32.totalorder 1, %s22
      %p313 = scmp.lt.s32.totalorder %s22, 3
      %p314 = pnand %p312, %p313
      %p315 = pneg %p314
      // Predicated region
      $region53: #{tpu_custom_call.1} parent=5 // pred_check
        _
      $region54: #{tpu_custom_call.1} parent=5 // pred_check_branch
        %317 = sbr.rel (%p314) target = $region56
      $region55: #{tpu_custom_call.1} parent=5 // pred_region
        %s318 = ssub.s32 %s22, 1
        %s319 = sand.u32 %s35, 1
        %s320 = scalar_lea.sflag [#allocation3], %s319
        %s321 = sand.u32 %s35, 1
        %s322 = smul.addr %s321, 8
        %s323 = scalar_lea.vmem [#allocation2], %s322
        // Predicated region
        $region57: #{tpu_custom_call.1} parent=55 // pred_check
          %p324 = pneg %p48
        $region58: #{tpu_custom_call.1} parent=55 // pred_check_branch
          %326 = sbr.rel (%p324) target = $region60
        $region59: #{tpu_custom_call.1} parent=55 // pred_region
          %327 = dma.done %s320, 128
        $region60: #{tpu_custom_call.1} parent=55 // pred_fallthru
          _
        // Predicated region
        $region61: #{tpu_custom_call.1} parent=55 // pred_check
          %p328 = pneg %p111
        $region62: #{tpu_custom_call.1} parent=55 // pred_check_branch
          %330 = sbr.rel (%p328) target = $region64
        $region63: #{tpu_custom_call.1} parent=55 // pred_region
          %331 = dma.done [#allocation6], 128
        $region64: #{tpu_custom_call.1} parent=55 // pred_fallthru
          _
        %s332 = sand.u32 %s35, 1
        %s333 = scalar_lea.sflag [#allocation3], %s332
        %s334 = sand.u32 %s35, 1
        %s335 = smul.addr %s334, 8
        %s336 = scalar_lea.vmem [#allocation2], %s335
        %p337 = pneg %p48
        %p338 = pneg %p45
        %p339 = pneg %p69
        %p340 = pneg %p66
        %p341 = pneg %p90
        %p342 = pneg %p87
        %p343 = pneg %p111
        %p344 = pneg %p108
        %p345 = pneg %p132
        %p346 = pneg %p129
        %p347 = pneg %p153
        %p348 = pneg %p150
        %p349 = pneg %p174
        %p350 = pneg %p171
        %p351 = pneg %p195
        %p352 = pneg %p192
        %p353 = pneg %p216
        %p354 = pneg %p213
        %p355 = pneg %p242
        %p356 = pneg %p239
        %s357 = sand.u32 %s229, 1
        %s358 = scalar_lea.sflag [#allocation4], %s357
        %s359 = sand.u32 %s229, 1
        %s360 = smul.addr %s359, 16
        %s361 = scalar_lea.vmem [#allocation7], %s360
        %v362 = vld [vmem:[%s1] sm:$0xff]
        %v363 = vld [vmem:[#allocation5] sm:$0xff]
        %v364 = vld [vmem:[%s4] sm:$0xff]
        %v365 = vld [vmem:[%s5] sm:$0xff]
        %v366 = vld [vmem:[%s6] sm:$0xff]
        %v367 = vld [vmem:[%s7] sm:$0xff]
        %v368 = vld [vmem:[%s323] sm:$0xff]
        %370 = vset.pattern.permute.xlu0 0
        %371 = vperm.xlu0 %370, %v365
        %v372 = vpop.permute.xlu0 %371
        %v375 = vcombine.high %v368, %v368
        %vm376 = vcmask 31744
        %v378 = vsel %vm376, %v362, 0
        %vm380 = vcmask 1043456
        %v381 = vsel %vm380, %v368, 0
        %v383 = vsel %vm380, %v375, 0
        %385 = vmatprep.subr.mxu0 0.0
        %386 = vmatpush1.msra.mxu0 0.0
        %387 = vmatprep.subr.mxu0 0.0
        %388 = vmatpush1.msra.mxu0 0.0
        %389 = vmatprep.subr.mxu0 0.0
        %390 = vmatpush1.msra.mxu0 0.0
        %391 = vmatprep.subr.mxu0 0.0
        %392 = vmatpush1.msra.mxu0 0.0
        %393 = vmatprep.subr.mxu0 0.0
        %394 = vmatpush1.msra.mxu0 0.0
        %395 = vmatprep.subr.mxu0 0.0
        %396 = vmatpush1.msra.mxu0 0.0
        %397 = vmatprep.subr.mxu0 0.0
        %398 = vmatpush1.msra.mxu0 0.0
        %399 = vmatprep.subr.mxu0 0.0
        %400 = vmatpush1.msra.mxu0 0.0
        %401 = vmatprep.subr.mxu0 0.0
        %402 = vmatpush1.msra.mxu0 0.0
        %403 = vmatprep.subr.mxu0 0.0
        %404 = vmatpush1.msra.mxu0 0.0
        %405 = vmatprep.subr.mxu0 0.0
        %406 = vmatpush1.msra.mxu0 0.0
        %407 = vmatprep.subr.mxu0 0.0
        %408 = vmatpush1.msra.mxu0 0.0
        %409 = vmatprep.subr.mxu0 0.0
        %410 = vmatpush1.msra.mxu0 0.0
        %411 = vmatprep.subr.mxu0 0.0
        %412 = vmatpush1.msra.mxu0 0.0
        %413 = vmatprep.subr.mxu0 0.0
        %414 = vmatpush1.msra.mxu0 0.0
        %415 = vmatprep.subr.mxu0 %v383
        %416 = vmatpush1.msra.mxu0 %v381
        %417 = vmatprep.subr.mxu0 0.0
        %418 = vmatpush2.msra.mxu0 0.0
        %419 = vmatprep.subr.mxu0 0.0
        %420 = vmatpush2.msra.mxu0 0.0
        %421 = vmatprep.subr.mxu0 0.0
        %422 = vmatpush2.msra.mxu0 0.0
        %423 = vmatprep.subr.mxu0 0.0
        %424 = vmatpush2.msra.mxu0 0.0
        %425 = vmatprep.subr.mxu0 0.0
        %426 = vmatpush2.msra.mxu0 0.0
        %427 = vmatprep.subr.mxu0 0.0
        %428 = vmatpush2.msra.mxu0 0.0
        %429 = vmatprep.subr.mxu0 0.0
        %430 = vmatpush2.msra.mxu0 0.0
        %431 = vmatprep.subr.mxu0 0.0
        %432 = vmatpush2.msra.mxu0 0.0
        %433 = vmatprep.subr.mxu0 0.0
        %434 = vmatpush2.msra.mxu0 0.0
        %435 = vmatprep.subr.mxu0 0.0
        %436 = vmatpush2.msra.mxu0 0.0
        %437 = vmatprep.subr.mxu0 0.0
        %438 = vmatpush2.msra.mxu0 0.0
        %439 = vmatprep.subr.mxu0 0.0
        %440 = vmatpush2.msra.mxu0 0.0
        %441 = vmatprep.subr.mxu0 0.0
        %442 = vmatpush2.msra.mxu0 0.0
        %443 = vmatprep.subr.mxu0 0.0
        %444 = vmatpush2.msra.mxu0 0.0
        %445 = vmatprep.subr.mxu0 0.0
        %446 = vmatpush2.msra.mxu0 0.0
        %447 = vmatprep.subr.mxu0 0.0
        %448 = vmatpush2.msra.mxu0 0.0
        %449 = vmatprep.mubr.f32.mxu0 0.0
        %450 = vmatmul.mubr.f32.gmra.mxu0 %v378
        %v451 = vpop.f32.mrf.mxu0
        %v452 = vadd.f32 %v372, %v451
        %v453 = vpop.f32.mrf.mxu0
        %v454 = vadd.f32 %v372, %v453
        %455 = vdwg.mxu0
        %v456 = vmax.f32 %v452, 0.0
        %v457 = vmax.f32 %v454, 0.0
        %458 = vrot.lane.b32.xlu0 %v456, 17
        %v459 = vpop.permute.xlu0 %458
        %460 = vrot.lane.b32.xlu0 %v457, 17
        %v461 = vpop.permute.xlu0 %460
        %v462 = vlaneseq
        %v463 = vand.u32 %v462, 127
        %vm464 = vcmp.lt.s32.totalorder %v463, 17
        %v465 = vsel %vm464, %v459, %v461
        %v466 = vsel %vm464, %v461, %v459
        %v467 = vld [vmem:[%s8] ss:$8 sm:$0x3]
        %v469 = vlaneseq
        %v470 = vshrl.u32 %v469, 7
        %v471 = vsub.s32 0, %v470
        %v472 = vrot.slane %v467, %v471
        %v473 = vlaneseq
        %v474 = vshrl.u32 %v473, 7
        %v475 = vsub.s32 1, %v474
        %v476 = vrot.slane %v467, %v475
        %v479 = vmul.f32 %v466, %v472
        %v480 = vmul.f32 %v465, %v476
        %481 = vrot.lane.b32.xlu0 %v456, 16
        %v482 = vpop.permute.xlu0 %481
        %483 = vrot.lane.b32.xlu0 %v457, 16
        %v484 = vpop.permute.xlu0 %483
        %vm485 = vcmp.lt.s32.totalorder %v463, 16
        %v486 = vsel %vm485, %v482, %v484
        %v487 = vsel %vm485, %v484, %v482
        %s488 = scalar_lea.vmem %s8, 1
        %v489 = vld [vmem:[%s488] ss:$8 sm:$0x3]
        %v491 = vlaneseq
        %v492 = vshrl.u32 %v491, 7
        %v493 = vsub.s32 0, %v492
        %v494 = vrot.slane %v489, %v493
        %v495 = vlaneseq
        %v496 = vshrl.u32 %v495, 7
        %v497 = vsub.s32 1, %v496
        %v498 = vrot.slane %v489, %v497
        %v501 = vmul.f32 %v487, %v494
        %v502 = vmul.f32 %v486, %v498
        %503 = vrot.lane.b32.xlu0 %v456, 15
        %v504 = vpop.permute.xlu0 %503
        %505 = vrot.lane.b32.xlu0 %v457, 15
        %v506 = vpop.permute.xlu0 %505
        %vm507 = vcmp.lt.s32.totalorder %v463, 15
        %v508 = vsel %vm507, %v504, %v506
        %v509 = vsel %vm507, %v506, %v504
        %s510 = scalar_lea.vmem %s8, 2
        %v511 = vld [vmem:[%s510] ss:$8 sm:$0x3]
        %v513 = vlaneseq
        %v514 = vshrl.u32 %v513, 7
        %v515 = vsub.s32 0, %v514
        %v516 = vrot.slane %v511, %v515
        %v517 = vlaneseq
        %v518 = vshrl.u32 %v517, 7
        %v519 = vsub.s32 1, %v518
        %v520 = vrot.slane %v511, %v519
        %v523 = vmul.f32 %v509, %v516
        %v524 = vmul.f32 %v508, %v520
        %v525 = vld [vmem:[%s2] sm:$0xff]
        %vm526 = vcmask 195584
        %v528 = vsel %vm526, %v525, 0
        %530 = vmatprep.subr.mxu0 0.0
        %531 = vmatpush1.msra.mxu0 0.0
        %532 = vmatprep.subr.mxu0 0.0
        %533 = vmatpush1.msra.mxu0 0.0
        %534 = vmatprep.subr.mxu0 0.0
        %535 = vmatpush1.msra.mxu0 0.0
        %536 = vmatprep.subr.mxu0 0.0
        %537 = vmatpush1.msra.mxu0 0.0
        %538 = vmatprep.subr.mxu0 0.0
        %539 = vmatpush1.msra.mxu0 0.0
        %540 = vmatprep.subr.mxu0 0.0
        %541 = vmatpush1.msra.mxu0 0.0
        %542 = vmatprep.subr.mxu0 0.0
        %543 = vmatpush1.msra.mxu0 0.0
        %544 = vmatprep.subr.mxu0 0.0
        %545 = vmatpush1.msra.mxu0 0.0
        %546 = vmatprep.subr.mxu0 0.0
        %547 = vmatpush1.msra.mxu0 0.0
        %548 = vmatprep.subr.mxu0 0.0
        %549 = vmatpush1.msra.mxu0 0.0
        %550 = vmatprep.subr.mxu0 0.0
        %551 = vmatpush1.msra.mxu0 0.0
        %552 = vmatprep.subr.mxu0 0.0
        %553 = vmatpush1.msra.mxu0 0.0
        %554 = vmatprep.subr.mxu0 0.0
        %555 = vmatpush1.msra.mxu0 0.0
        %556 = vmatprep.subr.mxu0 %v524
        %557 = vmatpush1.msra.mxu0 %v523
        %558 = vmatprep.subr.mxu0 %v502
        %559 = vmatpush1.msra.mxu0 %v501
        %560 = vmatprep.subr.mxu0 %v480
        %561 = vmatpush1.msra.mxu0 %v479
        %562 = vmatprep.subr.mxu0 0.0
        %563 = vmatpush2.msra.mxu0 0.0
        %564 = vmatprep.subr.mxu0 0.0
        %565 = vmatpush2.msra.mxu0 0.0
        %566 = vmatprep.subr.mxu0 0.0
        %567 = vmatpush2.msra.mxu0 0.0
        %568 = vmatprep.subr.mxu0 0.0
        %569 = vmatpush2.msra.mxu0 0.0
        %570 = vmatprep.subr.mxu0 0.0
        %571 = vmatpush2.msra.mxu0 0.0
        %572 = vmatprep.subr.mxu0 0.0
        %573 = vmatpush2.msra.mxu0 0.0
        %574 = vmatprep.subr.mxu0 0.0
        %575 = vmatpush2.msra.mxu0 0.0
        %576 = vmatprep.subr.mxu0 0.0
        %577 = vmatpush2.msra.mxu0 0.0
        %578 = vmatprep.subr.mxu0 0.0
        %579 = vmatpush2.msra.mxu0 0.0
        %580 = vmatprep.subr.mxu0 0.0
        %581 = vmatpush2.msra.mxu0 0.0
        %582 = vmatprep.subr.mxu0 0.0
        %583 = vmatpush2.msra.mxu0 0.0
        %584 = vmatprep.subr.mxu0 0.0
        %585 = vmatpush2.msra.mxu0 0.0
        %586 = vmatprep.subr.mxu0 0.0
        %587 = vmatpush2.msra.mxu0 0.0
        %588 = vmatprep.subr.mxu0 0.0
        %589 = vmatpush2.msra.mxu0 0.0
        %590 = vmatprep.subr.mxu0 0.0
        %591 = vmatpush2.msra.mxu0 0.0
        %592 = vmatprep.subr.mxu0 0.0
        %593 = vmatpush2.msra.mxu0 0.0
        %594 = vmatprep.mubr.f32.mxu0 0.0
        %595 = vmatmul.mubr.f32.gmra.mxu0 %v528
        %v596 = vpop.f32.mrf.mxu0
        %v597 = vadd.f32 0.0, %v596
        %v598 = vpop.f32.mrf.mxu0
        %v599 = vadd.f32 0.0, %v598
        %600 = vdwg.mxu0
        %602 = vset.pattern.permute.xlu0 0
        %603 = vperm.xlu0 %602, %v366
        %v604 = vpop.permute.xlu0 %603
        %v606 = vadd.f32 %v604, %v597
        %v607 = vadd.f32 %v604, %v599
        %608 = vrot.lane.b32.xlu0 %v456, 1
        %v609 = vpop.permute.xlu0 %608
        %610 = vrot.lane.b32.xlu0 %v457, 1
        %v611 = vpop.permute.xlu0 %610
        %vm612 = vcmp.lt.s32.totalorder %v463, 1
        %v613 = vsel %vm612, %v609, %v611
        %v614 = vsel %vm612, %v611, %v609
        %s615 = scalar_lea.vmem %s8, 3
        %v616 = vld [vmem:[%s615] ss:$8 sm:$0x3]
        %v618 = vlaneseq
        %v619 = vshrl.u32 %v618, 7
        %v620 = vsub.s32 0, %v619
        %v621 = vrot.slane %v616, %v620
        %v622 = vlaneseq
        %v623 = vshrl.u32 %v622, 7
        %v624 = vsub.s32 1, %v623
        %v625 = vrot.slane %v616, %v624
        %v628 = vmul.f32 %v614, %v621
        %v629 = vmul.f32 %v613, %v625
        %630 = vrot.lane.b32.xlu0 %v456, 127
        %v631 = vpop.permute.xlu0 %630
        %632 = vrot.lane.b32.xlu0 %v457, 127
        %v633 = vpop.permute.xlu0 %632
        %vm634 = vcmp.lt.s32.totalorder %v463, 127
        %v635 = vsel %vm634, %v631, %v633
        %v636 = vsel %vm634, %v633, %v631
        %s637 = scalar_lea.vmem %s8, 5
        %v638 = vld [vmem:[%s637] ss:$8 sm:$0x3]
        %v640 = vlaneseq
        %v641 = vshrl.u32 %v640, 7
        %v642 = vsub.s32 0, %v641
        %v643 = vrot.slane %v638, %v642
        %v644 = vlaneseq
        %v645 = vshrl.u32 %v644, 7
        %v646 = vsub.s32 1, %v645
        %v647 = vrot.slane %v638, %v646
        %v650 = vmul.f32 %v635, %v643
        %v651 = vmul.f32 %v636, %v647
        %s652 = scalar_lea.vmem %s2, 8
        %v653 = vld [vmem:[%s652] sm:$0xff]
        %v655 = vsel %vm526, %v653, 0
        %657 = vmatprep.subr.mxu0 0.0
        %658 = vmatpush1.msra.mxu0 0.0
        %659 = vmatprep.subr.mxu0 0.0
        %660 = vmatpush1.msra.mxu0 0.0
        %661 = vmatprep.subr.mxu0 0.0
        %662 = vmatpush1.msra.mxu0 0.0
        %663 = vmatprep.subr.mxu0 0.0
        %664 = vmatpush1.msra.mxu0 0.0
        %665 = vmatprep.subr.mxu0 0.0
        %666 = vmatpush1.msra.mxu0 0.0
        %667 = vmatprep.subr.mxu0 0.0
        %668 = vmatpush1.msra.mxu0 0.0
        %669 = vmatprep.subr.mxu0 0.0
        %670 = vmatpush1.msra.mxu0 0.0
        %671 = vmatprep.subr.mxu0 0.0
        %672 = vmatpush1.msra.mxu0 0.0
        %673 = vmatprep.subr.mxu0 0.0
        %674 = vmatpush1.msra.mxu0 0.0
        %675 = vmatprep.subr.mxu0 0.0
        %676 = vmatpush1.msra.mxu0 0.0
        %677 = vmatprep.subr.mxu0 0.0
        %678 = vmatpush1.msra.mxu0 0.0
        %679 = vmatprep.subr.mxu0 0.0
        %680 = vmatpush1.msra.mxu0 0.0
        %681 = vmatprep.subr.mxu0 0.0
        %682 = vmatpush1.msra.mxu0 0.0
        %683 = vmatprep.subr.mxu0 %v651
        %684 = vmatpush1.msra.mxu0 %v650
        %685 = vmatprep.subr.mxu0 %v457
        %686 = vmatpush1.msra.mxu0 %v456
        %687 = vmatprep.subr.mxu0 %v629
        %688 = vmatpush1.msra.mxu0 %v628
        %689 = vmatprep.subr.mxu0 0.0
        %690 = vmatpush2.msra.mxu0 0.0
        %691 = vmatprep.subr.mxu0 0.0
        %692 = vmatpush2.msra.mxu0 0.0
        %693 = vmatprep.subr.mxu0 0.0
        %694 = vmatpush2.msra.mxu0 0.0
        %695 = vmatprep.subr.mxu0 0.0
        %696 = vmatpush2.msra.mxu0 0.0
        %697 = vmatprep.subr.mxu0 0.0
        %698 = vmatpush2.msra.mxu0 0.0
        %699 = vmatprep.subr.mxu0 0.0
        %700 = vmatpush2.msra.mxu0 0.0
        %701 = vmatprep.subr.mxu0 0.0
        %702 = vmatpush2.msra.mxu0 0.0
        %703 = vmatprep.subr.mxu0 0.0
        %704 = vmatpush2.msra.mxu0 0.0
        %705 = vmatprep.subr.mxu0 0.0
        %706 = vmatpush2.msra.mxu0 0.0
        %707 = vmatprep.subr.mxu0 0.0
        %708 = vmatpush2.msra.mxu0 0.0
        %709 = vmatprep.subr.mxu0 0.0
        %710 = vmatpush2.msra.mxu0 0.0
        %711 = vmatprep.subr.mxu0 0.0
        %712 = vmatpush2.msra.mxu0 0.0
        %713 = vmatprep.subr.mxu0 0.0
        %714 = vmatpush2.msra.mxu0 0.0
        %715 = vmatprep.subr.mxu0 0.0
        %716 = vmatpush2.msra.mxu0 0.0
        %717 = vmatprep.subr.mxu0 0.0
        %718 = vmatpush2.msra.mxu0 0.0
        %719 = vmatprep.subr.mxu0 0.0
        %720 = vmatpush2.msra.mxu0 0.0
        %721 = vmatprep.mubr.f32.mxu0 0.0
        %722 = vmatmul.mubr.f32.gmra.mxu0 %v655
        %v723 = vpop.f32.mrf.mxu0
        %v724 = vadd.f32 0.0, %v723
        %v725 = vpop.f32.mrf.mxu0
        %v726 = vadd.f32 0.0, %v725
        %727 = vdwg.mxu0
        %v728 = vadd.f32 %v606, %v724
        %v729 = vadd.f32 %v607, %v726
        %730 = vrot.lane.b32.xlu0 %v456, 113
        %v731 = vpop.permute.xlu0 %730
        %732 = vrot.lane.b32.xlu0 %v457, 113
        %v733 = vpop.permute.xlu0 %732
        %vm734 = vcmp.lt.s32.totalorder %v463, 113
        %v735 = vsel %vm734, %v731, %v733
        %v736 = vsel %vm734, %v733, %v731
        %s737 = scalar_lea.vmem %s8, 6
        %v738 = vld [vmem:[%s737] ss:$8 sm:$0x3]
        %v740 = vlaneseq
        %v741 = vshrl.u32 %v740, 7
        %v742 = vsub.s32 0, %v741
        %v743 = vrot.slane %v738, %v742
        %v744 = vlaneseq
        %v745 = vshrl.u32 %v744, 7
        %v746 = vsub.s32 1, %v745
        %v747 = vrot.slane %v738, %v746
        %v750 = vmul.f32 %v735, %v743
        %v751 = vmul.f32 %v736, %v747
        %752 = vrot.lane.b32.xlu0 %v456, 112
        %v753 = vpop.permute.xlu0 %752
        %754 = vrot.lane.b32.xlu0 %v457, 112
        %v755 = vpop.permute.xlu0 %754
        %vm756 = vcmp.lt.s32.totalorder %v463, 112
        %v757 = vsel %vm756, %v753, %v755
        %v758 = vsel %vm756, %v755, %v753
        %s759 = scalar_lea.vmem %s8, 7
        %v760 = vld [vmem:[%s759] ss:$8 sm:$0x3]
        %v762 = vlaneseq
        %v763 = vshrl.u32 %v762, 7
        %v764 = vsub.s32 0, %v763
        %v765 = vrot.slane %v760, %v764
        %v766 = vlaneseq
        %v767 = vshrl.u32 %v766, 7
        %v768 = vsub.s32 1, %v767
        %v769 = vrot.slane %v760, %v768
        %v772 = vmul.f32 %v757, %v765
        %v773 = vmul.f32 %v758, %v769
        %774 = vrot.lane.b32.xlu0 %v456, 111
        %v775 = vpop.permute.xlu0 %774
        %776 = vrot.lane.b32.xlu0 %v457, 111
        %v777 = vpop.permute.xlu0 %776
        %vm778 = vcmp.lt.s32.totalorder %v463, 111
        %v779 = vsel %vm778, %v775, %v777
        %v780 = vsel %vm778, %v777, %v775
        %s781 = scalar_lea.vmem %s8, 16
        %v782 = vld [vmem:[%s781] ss:$8 sm:$0x3]
        %v784 = vlaneseq
        %v785 = vshrl.u32 %v784, 7
        %v786 = vsub.s32 0, %v785
        %v787 = vrot.slane %v782, %v786
        %v788 = vlaneseq
        %v789 = vshrl.u32 %v788, 7
        %v790 = vsub.s32 1, %v789
        %v791 = vrot.slane %v782, %v790
        %v794 = vmul.f32 %v779, %v787
        %v795 = vmul.f32 %v780, %v791
        %s796 = scalar_lea.vmem %s2, 16
        %v797 = vld [vmem:[%s796] sm:$0xff]
        %v799 = vsel %vm526, %v797, 0
        %801 = vmatprep.subr.mxu0 0.0
        %802 = vmatpush1.msra.mxu0 0.0
        %803 = vmatprep.subr.mxu0 0.0
        %804 = vmatpush1.msra.mxu0 0.0
        %805 = vmatprep.subr.mxu0 0.0
        %806 = vmatpush1.msra.mxu0 0.0
        %807 = vmatprep.subr.mxu0 0.0
        %808 = vmatpush1.msra.mxu0 0.0
        %809 = vmatprep.subr.mxu0 0.0
        %810 = vmatpush1.msra.mxu0 0.0
        %811 = vmatprep.subr.mxu0 0.0
        %812 = vmatpush1.msra.mxu0 0.0
        %813 = vmatprep.subr.mxu0 0.0
        %814 = vmatpush1.msra.mxu0 0.0
        %815 = vmatprep.subr.mxu0 0.0
        %816 = vmatpush1.msra.mxu0 0.0
        %817 = vmatprep.subr.mxu0 0.0
        %818 = vmatpush1.msra.mxu0 0.0
        %819 = vmatprep.subr.mxu0 0.0
        %820 = vmatpush1.msra.mxu0 0.0
        %821 = vmatprep.subr.mxu0 0.0
        %822 = vmatpush1.msra.mxu0 0.0
        %823 = vmatprep.subr.mxu0 0.0
        %824 = vmatpush1.msra.mxu0 0.0
        %825 = vmatprep.subr.mxu0 0.0
        %826 = vmatpush1.msra.mxu0 0.0
        %827 = vmatprep.subr.mxu0 %v795
        %828 = vmatpush1.msra.mxu0 %v794
        %829 = vmatprep.subr.mxu0 %v773
        %830 = vmatpush1.msra.mxu0 %v772
        %831 = vmatprep.subr.mxu0 %v751
        %832 = vmatpush1.msra.mxu0 %v750
        %833 = vmatprep.subr.mxu0 0.0
        %834 = vmatpush2.msra.mxu0 0.0
        %835 = vmatprep.subr.mxu0 0.0
        %836 = vmatpush2.msra.mxu0 0.0
        %837 = vmatprep.subr.mxu0 0.0
        %838 = vmatpush2.msra.mxu0 0.0
        %839 = vmatprep.subr.mxu0 0.0
        %840 = vmatpush2.msra.mxu0 0.0
        %841 = vmatprep.subr.mxu0 0.0
        %842 = vmatpush2.msra.mxu0 0.0
        %843 = vmatprep.subr.mxu0 0.0
        %844 = vmatpush2.msra.mxu0 0.0
        %845 = vmatprep.subr.mxu0 0.0
        %846 = vmatpush2.msra.mxu0 0.0
        %847 = vmatprep.subr.mxu0 0.0
        %848 = vmatpush2.msra.mxu0 0.0
        %849 = vmatprep.subr.mxu0 0.0
        %850 = vmatpush2.msra.mxu0 0.0
        %851 = vmatprep.subr.mxu0 0.0
        %852 = vmatpush2.msra.mxu0 0.0
        %853 = vmatprep.subr.mxu0 0.0
        %854 = vmatpush2.msra.mxu0 0.0
        %855 = vmatprep.subr.mxu0 0.0
        %856 = vmatpush2.msra.mxu0 0.0
        %857 = vmatprep.subr.mxu0 0.0
        %858 = vmatpush2.msra.mxu0 0.0
        %859 = vmatprep.subr.mxu0 0.0
        %860 = vmatpush2.msra.mxu0 0.0
        %861 = vmatprep.subr.mxu0 0.0
        %862 = vmatpush2.msra.mxu0 0.0
        %863 = vmatprep.subr.mxu0 0.0
        %864 = vmatpush2.msra.mxu0 0.0
        %865 = vmatprep.mubr.f32.mxu0 0.0
        %866 = vmatmul.mubr.f32.gmra.mxu0 %v799
        %v867 = vpop.f32.mrf.mxu0
        %v868 = vadd.f32 0.0, %v867
        %v869 = vpop.f32.mrf.mxu0
        %v870 = vadd.f32 0.0, %v869
        %871 = vdwg.mxu0
        %v872 = vadd.f32 %v728, %v868
        %v873 = vadd.f32 %v729, %v870
        %v874 = vmax.f32 %v872, 0.0
        %v875 = vmax.f32 %v873, 0.0
        %877 = vset.pattern.permute.xlu0 0
        %878 = vperm.xlu0 %877, %v364
        %v879 = vpop.permute.xlu0 %878
        %v881 = vmul.f32 %v879, %v874
        %v882 = vmul.f32 %v879, %v875
        %vm883 = vcmask 64512
        %v885 = vsel %vm883, %v363, 0
        %887 = vmatprep.subr.mxu0 0.0
        %888 = vmatpush1.msra.mxu0 0.0
        %889 = vmatprep.subr.mxu0 0.0
        %890 = vmatpush1.msra.mxu0 0.0
        %891 = vmatprep.subr.mxu0 0.0
        %892 = vmatpush1.msra.mxu0 0.0
        %893 = vmatprep.subr.mxu0 0.0
        %894 = vmatpush1.msra.mxu0 0.0
        %895 = vmatprep.subr.mxu0 0.0
        %896 = vmatpush1.msra.mxu0 0.0
        %897 = vmatprep.subr.mxu0 0.0
        %898 = vmatpush1.msra.mxu0 0.0
        %899 = vmatprep.subr.mxu0 0.0
        %900 = vmatpush1.msra.mxu0 0.0
        %901 = vmatprep.subr.mxu0 0.0
        %902 = vmatpush1.msra.mxu0 0.0
        %903 = vmatprep.subr.mxu0 0.0
        %904 = vmatpush1.msra.mxu0 0.0
        %905 = vmatprep.subr.mxu0 0.0
        %906 = vmatpush1.msra.mxu0 0.0
        %907 = vmatprep.subr.mxu0 0.0
        %908 = vmatpush1.msra.mxu0 0.0
        %909 = vmatprep.subr.mxu0 0.0
        %910 = vmatpush1.msra.mxu0 0.0
        %911 = vmatprep.subr.mxu0 0.0
        %912 = vmatpush1.msra.mxu0 0.0
        %913 = vmatprep.subr.mxu0 0.0
        %914 = vmatpush1.msra.mxu0 0.0
        %915 = vmatprep.subr.mxu0 0.0
        %916 = vmatpush1.msra.mxu0 0.0
        %917 = vmatprep.subr.mxu0 %v875
        %918 = vmatpush1.msra.mxu0 %v874
        %919 = vmatprep.subr.mxu0 0.0
        %920 = vmatpush2.msra.mxu0 0.0
        %921 = vmatprep.subr.mxu0 0.0
        %922 = vmatpush2.msra.mxu0 0.0
        %923 = vmatprep.subr.mxu0 0.0
        %924 = vmatpush2.msra.mxu0 0.0
        %925 = vmatprep.subr.mxu0 0.0
        %926 = vmatpush2.msra.mxu0 0.0
        %927 = vmatprep.subr.mxu0 0.0
        %928 = vmatpush2.msra.mxu0 0.0
        %929 = vmatprep.subr.mxu0 0.0
        %930 = vmatpush2.msra.mxu0 0.0
        %931 = vmatprep.subr.mxu0 0.0
        %932 = vmatpush2.msra.mxu0 0.0
        %933 = vmatprep.subr.mxu0 0.0
        %934 = vmatpush2.msra.mxu0 0.0
        %935 = vmatprep.subr.mxu0 0.0
        %936 = vmatpush2.msra.mxu0 0.0
        %937 = vmatprep.subr.mxu0 0.0
        %938 = vmatpush2.msra.mxu0 0.0
        %939 = vmatprep.subr.mxu0 0.0
        %940 = vmatpush2.msra.mxu0 0.0
        %941 = vmatprep.subr.mxu0 0.0
        %942 = vmatpush2.msra.mxu0 0.0
        %943 = vmatprep.subr.mxu0 0.0
        %944 = vmatpush2.msra.mxu0 0.0
        %945 = vmatprep.subr.mxu0 0.0
        %946 = vmatpush2.msra.mxu0 0.0
        %947 = vmatprep.subr.mxu0 0.0
        %948 = vmatpush2.msra.mxu0 0.0
        %949 = vmatprep.subr.mxu0 0.0
        %950 = vmatpush2.msra.mxu0 0.0
        %951 = vmatprep.mubr.f32.mxu0 0.0
        %952 = vmatmul.mubr.f32.gmra.mxu0 %v885
        %v953 = vpop.f32.mrf.mxu0
        %v954 = vadd.f32 0.0, %v953
        %v955 = vpop.f32.mrf.mxu0
        %v956 = vadd.f32 0.0, %v955
        %957 = vdwg.mxu0
        %v958 = vadd.f32 %v881, %v954
        %v959 = vadd.f32 %v882, %v956
        %961 = vset.pattern.permute.xlu0 0
        %962 = vperm.xlu0 %961, %v367
        %v963 = vpop.permute.xlu0 %962
        %v965 = vadd.f32 %v958, %v963
        %v966 = vadd.f32 %v959, %v963
        %v967 = vmax.f32 %v965, 0.0
        %v968 = vmax.f32 %v966, 0.0
        %969 = vst [vmem:[%s361] sm:$0xff] %v967
        %970 = vst [vmem:[%s361 + $0x8] sm:$0xff] %v968
        %s971 = sand.u32 %s229, 1
        %s972 = scalar_lea.sflag [#allocation4], %s971
        %s973 = sand.u32 %s229, 1
        %s974 = smul.addr %s973, 16
        %s975 = scalar_lea.vmem [#allocation7], %s974
        // Predicated region
        $region65: #{tpu_custom_call.1} parent=55 // pred_check
          %p976 = pneg %p239
        $region66: #{tpu_custom_call.1} parent=55 // pred_check_branch
          %978 = sbr.rel (%p976) target = $region68
        $region67: #{tpu_custom_call.1} parent=55 // pred_region
          %s980 = ssub.s32 256, 256
          %981 = vsyncadd %s972, %s980
          %s982 = smul.addr %s27, 2
          %s983 = smul.addr %s982, 128
          %s984 = scalar_lea.hbm %s9, %s983
          %s986 = sshll.u32 %s975, 4
          %s987 = int_to_ptr.vmem [resolvable:$true] %s986
          %989 = dma.vmem_to_hbm [thread:$0]  %s987, 256, %s984, %s972
        $region68: #{tpu_custom_call.1} parent=55 // pred_fallthru
          _
      $region56: #{tpu_custom_call.1} parent=5 // pred_fallthru
        _
      %p990 = scmp.le.s32.totalorder 2, %s22
      // Predicated region
      $region69: #{tpu_custom_call.1} parent=5 // pred_check
        %p991 = pneg %p990
      $region70: #{tpu_custom_call.1} parent=5 // pred_check_branch
        %993 = sbr.rel (%p991) target = $region72
      $region71: #{tpu_custom_call.1} parent=5 // pred_region
        %s994 = ssub.s32 %s22, 2
        // Predicated region
        $region73: #{tpu_custom_call.1} parent=71 // pred_check
          %p995 = pneg %p245
        $region74: #{tpu_custom_call.1} parent=71 // pred_check_branch
          %997 = sbr.rel (%p995) target = $region76
        $region75: #{tpu_custom_call.1} parent=71 // pred_region
          %s998 = sand.u32 %s230, 1
          %s999 = scalar_lea.sflag [#allocation4], %s998
          %s1000 = sand.u32 %s230, 1
          %s1001 = smul.addr %s1000, 16
          %s1002 = scalar_lea.vmem [#allocation7], %s1001
          %1003 = dma.done %s999, 256
        $region76: #{tpu_custom_call.1} parent=71 // pred_fallthru
          _
      $region72: #{tpu_custom_call.1} parent=5 // pred_fallthru
        _
    $region6: #{tpu_custom_call.1} parent=1 // loop_footer
      %s26 = sadd.s32 1, %s22
    $region7: #{tpu_custom_call.1} parent=1 // loop_footer_branch
      %21 = sbr.rel target = $region3
    $region8: #{tpu_custom_call.1} parent=1 // loop_exit
      _
    %1004 = vsyncpa [#allocation3], 1
    %s1005 = scalar_lea.sflag [#allocation3], 1
    %1006 = vsyncpa %s1005, 1
    %1007 = vsyncpa [#allocation6], 1
    %1008 = vsyncpa [#allocation4], 1
    %s1009 = scalar_lea.sflag [#allocation4], 1
    %1010 = vsyncpa %s1009, 1

</llo_original>
